<compile_context>
chip_gen: v6e
topology: v6e:2x2x1
jax: 0.10.0
libtpu: 0.0.40
codegen_flags: <defaults>
</compile_context>

<pallas_src>
import jax
import jax.numpy as jnp
from jax.experimental import pallas as pl
from jax.experimental.pallas import tpu as pltpu


LANE = 128        # vreg lane width / MXU column width
SUBLANE = 8       # f32 sublane width
TILE_B_MAX = 512  # batch rows per grid step (safe for v7x's smaller VMEM)


def _round_up(x, m):
    return ((x + m - 1) // m) * m


def _mlp_kernel(hh_ref, hr_ref, w0a_ref, w0b_ref, b0_ref,
                w1_ref, b1_ref, w2_ref, b2_ref, out_ref):
    # fc0 on concatenated [h_head, h_relation]:
    #   cat([hh, hr]) @ W0 == hh @ W0[:E] + hr @ W0[E:]
    x0 = (jnp.dot(hh_ref[...], w0a_ref[...], preferred_element_type=jnp.float32)
          + jnp.dot(hr_ref[...], w0b_ref[...], preferred_element_type=jnp.float32)
          + b0_ref[...])
    h0 = jax.nn.sigmoid(x0)                       # f32 math on VPU/EUP

    # fc1 + sigmoid (feed the MXU in the weight dtype, accumulate in f32)
    h0c = h0.astype(w1_ref.dtype)
    x1 = jnp.dot(h0c, w1_ref[...], preferred_element_type=jnp.float32) + b1_ref[...]
    h1 = jax.nn.sigmoid(x1)

    # fc_out (no activation)
    h1c = h1.astype(w2_ref.dtype)
    out = jnp.dot(h1c, w2_ref[...], preferred_element_type=jnp.float32) + b2_ref[...]
    out_ref[...] = out.astype(out_ref.dtype)


def vector_reconstruction_net(h_head, h_relation, params, *,
                              compute_dtype=jnp.float32, tile_b=None):
    """Pallas forward of VectorReconstructionNet.

    params: dict with
      w0: (2E, H)  b0: (H,)     -- fc0  (already transposed to (in, out))
      w1: (H, H)   b1: (H,)     -- fc1
      w2: (H, E)   b2: (E,)     -- fc_out
    compute_dtype: dtype of MXU operands (f32, or bf16 for v6e/v7x); accumulation
      and sigmoid math stay in f32, output is f32.
    """
    B, E = h_head.shape
    twoE, H = params["w0"].shape
    assert twoE == 2 * E and params["w1"].shape == (H, H)

    E_pad = _round_up(E, LANE)
    H_pad = _round_up(H, LANE)

    # batch tile: multiple of 8 sublanes, capped for VMEM double-buffering
    if tile_b is None:
        tile_b = min(TILE_B_MAX, _round_up(B, SUBLANE))
    B_pad = _round_up(_round_up(B, SUBLANE), tile_b)
    grid = (B_pad // tile_b,)

    def pad2(x, rows, cols):
        return jnp.pad(x, ((0, rows - x.shape[0]), (0, cols - x.shape[1])))

    # split fc0 weight into the h_head part and h_relation part, zero-pad to lanes
    w0a = pad2(params["w0"][:E, :], E_pad, H_pad).astype(compute_dtype)
    w0b = pad2(params["w0"][E:, :], E_pad, H_pad).astype(compute_dtype)
    w1 = pad2(params["w1"], H_pad, H_pad).astype(compute_dtype)
    w2 = pad2(params["w2"], H_pad, E_pad).astype(compute_dtype)
    # biases stay f32 (added post-accumulation), as (1, dim) lane-padded rows
    b0 = pad2(params["b0"].reshape(1, H).astype(jnp.float32), 1, H_pad)
    b1 = pad2(params["b1"].reshape(1, H).astype(jnp.float32), 1, H_pad)
    b2 = pad2(params["b2"].reshape(1, E).astype(jnp.float32), 1, E_pad)

    hh = pad2(h_head, B_pad, E_pad).astype(compute_dtype)
    hr = pad2(h_relation, B_pad, E_pad).astype(compute_dtype)

    itm = jnp.dtype(compute_dtype).itemsize
    bytes_accessed = (
        2 * B_pad * E_pad * itm                       # hh, hr
        + (2 * E_pad * H_pad + H_pad * H_pad + H_pad * E_pad) * itm  # weights
        + (2 * H_pad + E_pad) * 4                     # biases
        + B_pad * E_pad * 4                           # output
    )
    cost = pl.CostEstimate(
        flops=2 * B_pad * (2 * E_pad * H_pad + H_pad * H_pad + H_pad * E_pad),
        transcendentals=2 * B_pad * H_pad,
        bytes_accessed=bytes_accessed,
    )

    def batch_spec(cols):
        return pl.BlockSpec((tile_b, cols), lambda i: (i, 0))

    def const_spec(shape):
        return pl.BlockSpec(shape, lambda i: (0, 0))

    out_pad = pl.pallas_call(
        _mlp_kernel,
        out_shape=jax.ShapeDtypeStruct((B_pad, E_pad), jnp.float32),
        grid=grid,
        in_specs=[
            batch_spec(E_pad),            # h_head tile   (pipelined)
            batch_spec(E_pad),            # h_relation tile
            const_spec((E_pad, H_pad)),   # w0a (VMEM-resident across steps)
            const_spec((E_pad, H_pad)),   # w0b
            const_spec((1, H_pad)),       # b0
            const_spec((H_pad, H_pad)),   # w1
            const_spec((1, H_pad)),       # b1
            const_spec((H_pad, E_pad)),   # w2
            const_spec((1, E_pad)),       # b2
        ],
        out_specs=batch_spec(E_pad),
        compiler_params=pltpu.CompilerParams(
            dimension_semantics=("parallel",)),
        cost_estimate=cost,
    )(hh, hr, w0a, w0b, b0, w1, b1, w2, b2)

    return out_pad[:B, :E]


def init_params(key, embedding_dim, hidden_dim):
    """Deterministic init matching the PyTorch module: weights ~ N(0,1), biases = 0.
    PyTorch Linear stores (out, in); we store the transpose (in, out)."""
    k0, k1, k2 = jax.random.split(key, 3)
    return {
        "w0": jax.random.normal(k0, (2 * embedding_dim, hidden_dim), jnp.float32),
        "b0": jnp.zeros((hidden_dim,), jnp.float32),
        "w1": jax.random.normal(k1, (hidden_dim, hidden_dim), jnp.float32),
        "b1": jnp.zeros((hidden_dim,), jnp.float32),
        "w2": jax.random.normal(k2, (hidden_dim, embedding_dim), jnp.float32),
        "b2": jnp.zeros((embedding_dim,), jnp.float32),
    }


def reference_forward(h_head, h_relation, params):
    # pure-JAX reference (same math as the PyTorch module)
    x = jnp.concatenate([h_head, h_relation], axis=1)
    h0 = jax.nn.sigmoid(x @ params["w0"] + params["b0"])
    h1 = jax.nn.sigmoid(h0 @ params["w1"] + params["b1"])
    return h1 @ params["w2"] + params["b2"]


if __name__ == "__main__":
    embedding_dim = 16
    hidden_dim = 32

    key = jax.random.PRNGKey(0)
    k_p, k_h, k_r = jax.random.split(key, 3)
    params = init_params(k_p, embedding_dim, hidden_dim)

    # small shapes consistent with the module
    batch = 8
    h_head = jax.random.normal(k_h, (batch, embedding_dim), jnp.float32)
    h_relation = jax.random.normal(k_r, (batch, embedding_dim), jnp.float32)

    out = vector_reconstruction_net(h_head, h_relation, params)
    out = jax.block_until_ready(out)
    ref = reference_forward(h_head, h_relation, params)
    assert out.shape == (batch, embedding_dim)
    assert jnp.allclose(out, ref, atol=1e-4, rtol=1e-4)

    # larger, non-multiple-of-tile batch: exercises the batch grid / pipelining
    batch2 = 1000
    kh2, kr2 = jax.random.split(jax.random.PRNGKey(1))
    hh2 = jax.random.normal(kh2, (batch2, embedding_dim), jnp.float32)
    hr2 = jax.random.normal(kr2, (batch2, embedding_dim), jnp.float32)
    out2 = jax.block_until_ready(vector_reconstruction_net(hh2, hr2, params))
    ref2 = reference_forward(hh2, hr2, params)
    assert out2.shape == (batch2, embedding_dim)
    assert jnp.allclose(out2, ref2, atol=1e-4, rtol=1e-4)

    # bf16-operand path (v6e/v7x MXU / HBM-traffic win); f32 accumulation keeps
    # accuracy reasonable — run to verify it compiles/executes.
    out_bf16 = jax.block_until_ready(
        vector_reconstruction_net(hh2, hr2, params, compute_dtype=jnp.bfloat16))
    assert out_bf16.shape == (batch2, embedding_dim)

    print("KERNEL_OK")
</pallas_src>

<mosaic_0001>
module attributes {stable_mosaic.version = 11 : i64} {
  func.func @_mlp_kernel(%arg0: i32, %arg1: memref<8x128xf32, #tpu.memory_space<vmem>>, %arg2: memref<8x128xf32, #tpu.memory_space<vmem>>, %arg3: memref<128x128xf32, #tpu.memory_space<vmem>>, %arg4: memref<128x128xf32, #tpu.memory_space<vmem>>, %arg5: memref<1x128xf32, #tpu.memory_space<vmem>>, %arg6: memref<128x128xf32, #tpu.memory_space<vmem>>, %arg7: memref<1x128xf32, #tpu.memory_space<vmem>>, %arg8: memref<128x128xf32, #tpu.memory_space<vmem>>, %arg9: memref<1x128xf32, #tpu.memory_space<vmem>>, %arg10: memref<8x128xf32, #tpu.memory_space<vmem>>) attributes {dimension_semantics = [#tpu.dimension_semantics<parallel>], iteration_bounds = array<i64: 1>, scalar_prefetch = 0 : i64, scratch_operands = 0 : i64, tpu.core_type = #tpu.core_type<tc>, window_params = [{transform_indices = @transform_0, window_bounds = array<i64: 8, 128>}, {transform_indices = @transform_1, window_bounds = array<i64: 8, 128>}, {pipeline_mode = #tpu.pipeline_mode<synchronous>, transform_indices = @transform_2, window_bounds = array<i64: 128, 128>}, {pipeline_mode = #tpu.pipeline_mode<synchronous>, transform_indices = @transform_3, window_bounds = array<i64: 128, 128>}, {pipeline_mode = #tpu.pipeline_mode<synchronous>, transform_indices = @transform_4, window_bounds = array<i64: 1, 128>}, {pipeline_mode = #tpu.pipeline_mode<synchronous>, transform_indices = @transform_5, window_bounds = array<i64: 128, 128>}, {pipeline_mode = #tpu.pipeline_mode<synchronous>, transform_indices = @transform_6, window_bounds = array<i64: 1, 128>}, {pipeline_mode = #tpu.pipeline_mode<synchronous>, transform_indices = @transform_7, window_bounds = array<i64: 128, 128>}, {pipeline_mode = #tpu.pipeline_mode<synchronous>, transform_indices = @transform_8, window_bounds = array<i64: 1, 128>}, {transform_indices = @transform_9, window_bounds = array<i64: 8, 128>}]} {
    %c0 = arith.constant 0 : index
    %c0_0 = arith.constant 0 : index
    %0 = vector.load %arg1[%c0, %c0_0] : memref<8x128xf32, #tpu.memory_space<vmem>>, vector<8x128xf32>
    %c0_1 = arith.constant 0 : index
    %c0_2 = arith.constant 0 : index
    %1 = vector.load %arg3[%c0_1, %c0_2] : memref<128x128xf32, #tpu.memory_space<vmem>>, vector<128x128xf32>
    %cst = arith.constant dense<0.000000e+00> : vector<8x128xf32>
    %2 = tpu.matmul %0, %1, %cst {dimension_numbers = #tpu.dot_dimension_numbers<[1], [0], [0], [1], [0, 0, 1, 1], [], []>} : vector<8x128xf32>, vector<128x128xf32>, vector<8x128xf32> -> vector<8x128xf32>
    %c0_3 = arith.constant 0 : index
    %c0_4 = arith.constant 0 : index
    %3 = vector.load %arg2[%c0_3, %c0_4] : memref<8x128xf32, #tpu.memory_space<vmem>>, vector<8x128xf32>
    %c0_5 = arith.constant 0 : index
    %c0_6 = arith.constant 0 : index
    %4 = vector.load %arg4[%c0_5, %c0_6] : memref<128x128xf32, #tpu.memory_space<vmem>>, vector<128x128xf32>
    %cst_7 = arith.constant dense<0.000000e+00> : vector<8x128xf32>
    %5 = tpu.matmul %3, %4, %cst_7 {dimension_numbers = #tpu.dot_dimension_numbers<[1], [0], [0], [1], [0, 0, 1, 1], [], []>} : vector<8x128xf32>, vector<128x128xf32>, vector<8x128xf32> -> vector<8x128xf32>
    %6 = arith.addf %2, %5 : vector<8x128xf32>
    %c0_8 = arith.constant 0 : index
    %c0_9 = arith.constant 0 : index
    %7 = vector.load %arg5[%c0_8, %c0_9] : memref<1x128xf32, #tpu.memory_space<vmem>>, vector<1x128xf32>
    %8 = vector.broadcast %7 : vector<1x128xf32> to vector<8x128xf32>
    %9 = arith.addf %6, %8 : vector<8x128xf32>
    %10 = arith.negf %9 : vector<8x128xf32>
    %11 = math.exp %10 : vector<8x128xf32>
    %cst_10 = arith.constant 1.000000e+00 : f32
    %12 = vector.broadcast %cst_10 : f32 to vector<8x128xf32>
    %13 = arith.addf %12, %11 : vector<8x128xf32>
    %14 = arith.divf %12, %13 : vector<8x128xf32>
    %c0_11 = arith.constant 0 : index
    %c0_12 = arith.constant 0 : index
    %15 = vector.load %arg6[%c0_11, %c0_12] : memref<128x128xf32, #tpu.memory_space<vmem>>, vector<128x128xf32>
    %cst_13 = arith.constant dense<0.000000e+00> : vector<8x128xf32>
    %16 = tpu.matmul %14, %15, %cst_13 {dimension_numbers = #tpu.dot_dimension_numbers<[1], [0], [0], [1], [0, 0, 1, 1], [], []>} : vector<8x128xf32>, vector<128x128xf32>, vector<8x128xf32> -> vector<8x128xf32>
    %c0_14 = arith.constant 0 : index
    %c0_15 = arith.constant 0 : index
    %17 = vector.load %arg7[%c0_14, %c0_15] : memref<1x128xf32, #tpu.memory_space<vmem>>, vector<1x128xf32>
    %18 = vector.broadcast %17 : vector<1x128xf32> to vector<8x128xf32>
    %19 = arith.addf %16, %18 : vector<8x128xf32>
    %20 = arith.negf %19 : vector<8x128xf32>
    %21 = math.exp %20 : vector<8x128xf32>
    %cst_16 = arith.constant 1.000000e+00 : f32
    %22 = vector.broadcast %cst_16 : f32 to vector<8x128xf32>
    %23 = arith.addf %22, %21 : vector<8x128xf32>
    %24 = arith.divf %22, %23 : vector<8x128xf32>
    %c0_17 = arith.constant 0 : index
    %c0_18 = arith.constant 0 : index
    %25 = vector.load %arg8[%c0_17, %c0_18] : memref<128x128xf32, #tpu.memory_space<vmem>>, vector<128x128xf32>
    %cst_19 = arith.constant dense<0.000000e+00> : vector<8x128xf32>
    %26 = tpu.matmul %24, %25, %cst_19 {dimension_numbers = #tpu.dot_dimension_numbers<[1], [0], [0], [1], [0, 0, 1, 1], [], []>} : vector<8x128xf32>, vector<128x128xf32>, vector<8x128xf32> -> vector<8x128xf32>
    %c0_20 = arith.constant 0 : index
    %c0_21 = arith.constant 0 : index
    %27 = vector.load %arg9[%c0_20, %c0_21] : memref<1x128xf32, #tpu.memory_space<vmem>>, vector<1x128xf32>
    %28 = vector.broadcast %27 : vector<1x128xf32> to vector<8x128xf32>
    %29 = arith.addf %26, %28 : vector<8x128xf32>
    %c0_22 = arith.constant 0 : index
    %c0_23 = arith.constant 0 : index
    %30 = vector.load %arg10[%c0_22, %c0_23] : memref<8x128xf32, #tpu.memory_space<vmem>>, vector<8x128xf32>
    tpu.vector_store %arg10[%c0_22, %c0_23], %29 {strides = array<i32>} : memref<8x128xf32, #tpu.memory_space<vmem>>, vector<8x128xf32>,
    return
  }
  func.func @transform_0(%arg0: i32) -> (i32, i32) {
    %c0_i32 = arith.constant 0 : i32
    %c0_i32_0 = arith.constant 0 : i32
    return %arg0, %c0_i32 : i32, i32
  }
  func.func @transform_1(%arg0: i32) -> (i32, i32) {
    %c0_i32 = arith.constant 0 : i32
    %c0_i32_0 = arith.constant 0 : i32
    return %arg0, %c0_i32 : i32, i32
  }
  func.func @transform_2(%arg0: i32) -> (i32, i32) {
    %c0_i32 = arith.constant 0 : i32
    %c0_i32_0 = arith.constant 0 : i32
    %c0_i32_1 = arith.constant 0 : i32
    return %c0_i32, %c0_i32_0 : i32, i32
  }
  func.func @transform_3(%arg0: i32) -> (i32, i32) {
    %c0_i32 = arith.constant 0 : i32
    %c0_i32_0 = arith.constant 0 : i32
    %c0_i32_1 = arith.constant 0 : i32
    return %c0_i32, %c0_i32_0 : i32, i32
  }
  func.func @transform_4(%arg0: i32) -> (i32, i32) {
    %c0_i32 = arith.constant 0 : i32
    %c0_i32_0 = arith.constant 0 : i32
    %c0_i32_1 = arith.constant 0 : i32
    return %c0_i32, %c0_i32_0 : i32, i32
  }
  func.func @transform_5(%arg0: i32) -> (i32, i32) {
    %c0_i32 = arith.constant 0 : i32
    %c0_i32_0 = arith.constant 0 : i32
    %c0_i32_1 = arith.constant 0 : i32
    return %c0_i32, %c0_i32_0 : i32, i32
  }
  func.func @transform_6(%arg0: i32) -> (i32, i32) {
    %c0_i32 = arith.constant 0 : i32
    %c0_i32_0 = arith.constant 0 : i32
    %c0_i32_1 = arith.constant 0 : i32
    return %c0_i32, %c0_i32_0 : i32, i32
  }
  func.func @transform_7(%arg0: i32) -> (i32, i32) {
    %c0_i32 = arith.constant 0 : i32
    %c0_i32_0 = arith.constant 0 : i32
    %c0_i32_1 = arith.constant 0 : i32
    return %c0_i32, %c0_i32_0 : i32, i32
  }
  func.func @transform_8(%arg0: i32) -> (i32, i32) {
    %c0_i32 = arith.constant 0 : i32
    %c0_i32_0 = arith.constant 0 : i32
    %c0_i32_1 = arith.constant 0 : i32
    return %c0_i32, %c0_i32_0 : i32, i32
  }
  func.func @transform_9(%arg0: i32) -> (i32, i32) {
    %c0_i32 = arith.constant 0 : i32
    %c0_i32_0 = arith.constant 0 : i32
    return %arg0, %c0_i32 : i32, i32
  }
}

</mosaic_0001>

<llo_original>
// kernel: tpu_custom_call.1
$region0: #{tpu_custom_call.1}
  #allocation0 [shape = 'u32[]', space=smem, size = 0x4, offset = 0x4, fixed_abs, tag = 'smem constant byte address 0x4 - core index']
  #allocation1 [shape = 'u32[144,128]{1,0:T(1,128)}', space=vmem, size = 0x12000, scoped, tag = 'internal scratch']
  %s0 = inlined_call_operand.hbm [shape: f32[8,128], index: 0, kind: input, shape index: {}]
  %s1 = inlined_call_operand.hbm [shape: f32[8,128], index: 1, kind: input, shape index: {}]
  %s2 = inlined_call_operand.hbm [shape: f32[128,128], index: 2, kind: input, shape index: {}]
  %s3 = inlined_call_operand.hbm [shape: f32[128,128], index: 3, kind: input, shape index: {}]
  %s4 = inlined_call_operand.vmem [shape: f32[1,128], index: 4, kind: input, shape index: {}]
  %s5 = inlined_call_operand.hbm [shape: f32[128,128], index: 5, kind: input, shape index: {}]
  %s6 = inlined_call_operand.vmem [shape: f32[1,128], index: 6, kind: input, shape index: {}]
  %s7 = inlined_call_operand.hbm [shape: f32[128,128], index: 7, kind: input, shape index: {}]
  %s8 = inlined_call_operand.vmem [shape: f32[1,128], index: 8, kind: input, shape index: {}]
  %s9 = inlined_call_operand.hbm [shape: f32[8,128], index: 9, kind: output, shape index: {}]
  %s10 = sld [smem:[#allocation0]]
  $region70: #{tpu_custom_call.1} parent=0
    _
  %s12 = ssub.s32 1, %s10
  %s13 = scalar_select 0, %s12, %s10
  $region1: #{tpu_custom_call.1} parent=0
    #allocation2 [shape = 'u8[4096]{0}', space=vmem, size = 0x1000, scoped, tag = 'input window, operand 0, single buffered']
    #allocation3 [shape = 's32[1]{0}', space=sflag, size = 0x4, scoped, tag = 'scoped memory for tpu_custom_call.1']
    #allocation4 [shape = 's32[1]{0}', space=sflag, size = 0x4, scoped, tag = 'scoped memory for tpu_custom_call.1']
    #allocation5 [shape = 'u8[4096]{0}', space=vmem, size = 0x1000, scoped, tag = 'input window, operand 1, single buffered']
    #allocation6 [shape = 's32[1]{0}', space=sflag, size = 0x4, scoped, tag = 'scoped memory for tpu_custom_call.1']
    #allocation7 [shape = 'u8[65536]{0}', space=vmem, size = 0x10000, scoped, tag = 'input window, operand 2, single buffered']
    #allocation8 [shape = 'u8[65536]{0}', space=vmem, size = 0x10000, scoped, tag = 'input window, operand 3, single buffered']
    #allocation9 [shape = 's32[1]{0}', space=sflag, size = 0x4, scoped, tag = 'scoped memory for tpu_custom_call.1']
    #allocation10 [shape = 'u8[65536]{0}', space=vmem, size = 0x10000, scoped, tag = 'input window, operand 5, single buffered']
    #allocation11 [shape = 'u8[65536]{0}', space=vmem, size = 0x10000, scoped, tag = 'input window, operand 7, single buffered']
    #allocation12 [shape = 's32[1]{0}', space=sflag, size = 0x4, scoped, tag = 'scoped memory for tpu_custom_call.1']
    #allocation13 [shape = 'u8[4096]{0}', space=vmem, size = 0x1000, scoped, tag = 'output window, operand 0, single buffered']
    %14 = vsyncpa [#allocation3], 0
    %15 = vsyncpa [#allocation6], 0
    %16 = vsyncpa [#allocation9], 0
    %17 = vsyncpa [#allocation12], 0
    %18 = vsyncpa [#allocation4], 0
    // Predicated region
    $region2: #{tpu_custom_call.1} parent=1 // pred_check
      _
    $region3: #{tpu_custom_call.1} parent=1 // pred_check_branch
      %20 = sbr.rel (0) target = $region5
    $region4: #{tpu_custom_call.1} parent=1 // pred_region
      %s22 = ssub.s32 128, 128
      %23 = vsyncadd [#allocation3], %s22
      %s25 = sshll.u32 [#allocation2], 4
      %s26 = int_to_ptr.vmem [resolvable:$true] %s25
      %28 = dma.hbm_to_vmem [thread:$0]  %s0, 128, %s26, [#allocation3]
    $region5: #{tpu_custom_call.1} parent=1 // pred_fallthru
      _
    // Predicated region
    $region6: #{tpu_custom_call.1} parent=1 // pred_check
      _
    $region7: #{tpu_custom_call.1} parent=1 // pred_check_branch
      %30 = sbr.rel (0) target = $region9
    $region8: #{tpu_custom_call.1} parent=1 // pred_region
      %s32 = ssub.s32 128, 128
      %33 = vsyncadd [#allocation6], %s32
      %s35 = sshll.u32 [#allocation5], 4
      %s36 = int_to_ptr.vmem [resolvable:$true] %s35
      %38 = dma.hbm_to_vmem [thread:$0]  %s1, 128, %s36, [#allocation6]
    $region9: #{tpu_custom_call.1} parent=1 // pred_fallthru
      _
    // Predicated region
    $region10: #{tpu_custom_call.1} parent=1 // pred_check
      _
    $region11: #{tpu_custom_call.1} parent=1 // pred_check_branch
      %40 = sbr.rel (0) target = $region13
    $region12: #{tpu_custom_call.1} parent=1 // pred_region
      %s42 = ssub.s32 2048, 2048
      %43 = vsyncadd [#allocation6], %s42
      %s44 = sshll.u32 [#allocation7], 4
      %s45 = int_to_ptr.vmem [resolvable:$true] %s44
      %50 = dma.hbm_to_vmem [thread:$0]  %s2, 2048, %s45, [#allocation6], 128, 128, 8
    $region13: #{tpu_custom_call.1} parent=1 // pred_fallthru
      _
    // Predicated region
    $region14: #{tpu_custom_call.1} parent=1 // pred_check
      _
    $region15: #{tpu_custom_call.1} parent=1 // pred_check_branch
      %52 = sbr.rel (0) target = $region17
    $region16: #{tpu_custom_call.1} parent=1 // pred_region
      %s54 = ssub.s32 2048, 2048
      %55 = vsyncadd [#allocation9], %s54
      %s56 = sshll.u32 [#allocation8], 4
      %s57 = int_to_ptr.vmem [resolvable:$true] %s56
      %62 = dma.hbm_to_vmem [thread:$0]  %s3, 2048, %s57, [#allocation9], 128, 128, 8
    $region17: #{tpu_custom_call.1} parent=1 // pred_fallthru
      _
    // Predicated region
    $region18: #{tpu_custom_call.1} parent=1 // pred_check
      _
    $region19: #{tpu_custom_call.1} parent=1 // pred_check_branch
      %64 = sbr.rel (0) target = $region21
    $region20: #{tpu_custom_call.1} parent=1 // pred_region
      _
    $region21: #{tpu_custom_call.1} parent=1 // pred_fallthru
      _
    // Predicated region
    $region22: #{tpu_custom_call.1} parent=1 // pred_check
      _
    $region23: #{tpu_custom_call.1} parent=1 // pred_check_branch
      %66 = sbr.rel (0) target = $region25
    $region24: #{tpu_custom_call.1} parent=1 // pred_region
      %s68 = ssub.s32 2048, 2048
      %69 = vsyncadd [#allocation9], %s68
      %s70 = sshll.u32 [#allocation10], 4
      %s71 = int_to_ptr.vmem [resolvable:$true] %s70
      %76 = dma.hbm_to_vmem [thread:$0]  %s5, 2048, %s71, [#allocation9], 128, 128, 8
    $region25: #{tpu_custom_call.1} parent=1 // pred_fallthru
      _
    // Predicated region
    $region26: #{tpu_custom_call.1} parent=1 // pred_check
      _
    $region27: #{tpu_custom_call.1} parent=1 // pred_check_branch
      %78 = sbr.rel (0) target = $region29
    $region28: #{tpu_custom_call.1} parent=1 // pred_region
      _
    $region29: #{tpu_custom_call.1} parent=1 // pred_fallthru
      _
    // Predicated region
    $region30: #{tpu_custom_call.1} parent=1 // pred_check
      _
    $region31: #{tpu_custom_call.1} parent=1 // pred_check_branch
      %80 = sbr.rel (0) target = $region33
    $region32: #{tpu_custom_call.1} parent=1 // pred_region
      %s82 = ssub.s32 2048, 2048
      %83 = vsyncadd [#allocation12], %s82
      %s84 = sshll.u32 [#allocation11], 4
      %s85 = int_to_ptr.vmem [resolvable:$true] %s84
      %90 = dma.hbm_to_vmem [thread:$0]  %s7, 2048, %s85, [#allocation12], 128, 128, 8
    $region33: #{tpu_custom_call.1} parent=1 // pred_fallthru
      _
    // Predicated region
    $region34: #{tpu_custom_call.1} parent=1 // pred_check
      _
    $region35: #{tpu_custom_call.1} parent=1 // pred_check_branch
      %92 = sbr.rel (0) target = $region37
    $region36: #{tpu_custom_call.1} parent=1 // pred_region
      _
    $region37: #{tpu_custom_call.1} parent=1 // pred_fallthru
      _
    // Predicated region
    $region38: #{tpu_custom_call.1} parent=1 // pred_check
      _
    $region39: #{tpu_custom_call.1} parent=1 // pred_check_branch
      %94 = sbr.rel (0) target = $region41
    $region40: #{tpu_custom_call.1} parent=1 // pred_region
      %95 = dma.done [#allocation3], 128
    $region41: #{tpu_custom_call.1} parent=1 // pred_fallthru
      _
    // Predicated region
    $region42: #{tpu_custom_call.1} parent=1 // pred_check
      _
    $region43: #{tpu_custom_call.1} parent=1 // pred_check_branch
      %97 = sbr.rel (0) target = $region45
    $region44: #{tpu_custom_call.1} parent=1 // pred_region
      %98 = dma.done [#allocation6], 128
    $region45: #{tpu_custom_call.1} parent=1 // pred_fallthru
      _
    // Predicated region
    $region46: #{tpu_custom_call.1} parent=1 // pred_check
      _
    $region47: #{tpu_custom_call.1} parent=1 // pred_check_branch
      %100 = sbr.rel (0) target = $region49
    $region48: #{tpu_custom_call.1} parent=1 // pred_region
      %101 = dma.done [#allocation6], 2048
    $region49: #{tpu_custom_call.1} parent=1 // pred_fallthru
      _
    // Predicated region
    $region50: #{tpu_custom_call.1} parent=1 // pred_check
      _
    $region51: #{tpu_custom_call.1} parent=1 // pred_check_branch
      %103 = sbr.rel (0) target = $region53
    $region52: #{tpu_custom_call.1} parent=1 // pred_region
      %104 = dma.done [#allocation9], 2048
    $region53: #{tpu_custom_call.1} parent=1 // pred_fallthru
      _
    // Predicated region
    $region54: #{tpu_custom_call.1} parent=1 // pred_check
      _
    $region55: #{tpu_custom_call.1} parent=1 // pred_check_branch
      %106 = sbr.rel (0) target = $region57
    $region56: #{tpu_custom_call.1} parent=1 // pred_region
      %107 = dma.done [#allocation9], 2048
    $region57: #{tpu_custom_call.1} parent=1 // pred_fallthru
      _
    // Predicated region
    $region58: #{tpu_custom_call.1} parent=1 // pred_check
      _
    $region59: #{tpu_custom_call.1} parent=1 // pred_check_branch
      %109 = sbr.rel (0) target = $region61
    $region60: #{tpu_custom_call.1} parent=1 // pred_region
      %110 = dma.done [#allocation12], 2048
    $region61: #{tpu_custom_call.1} parent=1 // pred_fallthru
      _
    %v111 = vld [vmem:[#allocation2] sm:$0xff]
    %v112 = vld [vmem:[#allocation7] sm:$0xff]
    %v113 = vld [vmem:[#allocation7 + $0x8] sm:$0xff]
    %v114 = vld [vmem:[#allocation7 + $0x10] sm:$0xff]
    %v115 = vld [vmem:[#allocation7 + $0x18] sm:$0xff]
    %v116 = vld [vmem:[#allocation7 + $0x20] sm:$0xff]
    %v117 = vld [vmem:[#allocation7 + $0x28] sm:$0xff]
    %v118 = vld [vmem:[#allocation7 + $0x30] sm:$0xff]
    %v119 = vld [vmem:[#allocation7 + $0x38] sm:$0xff]
    %v120 = vld [vmem:[#allocation7 + $0x40] sm:$0xff]
    %v121 = vld [vmem:[#allocation7 + $0x48] sm:$0xff]
    %v122 = vld [vmem:[#allocation7 + $0x50] sm:$0xff]
    %v123 = vld [vmem:[#allocation7 + $0x58] sm:$0xff]
    %v124 = vld [vmem:[#allocation7 + $0x60] sm:$0xff]
    %v125 = vld [vmem:[#allocation7 + $0x68] sm:$0xff]
    %v126 = vld [vmem:[#allocation7 + $0x70] sm:$0xff]
    %v127 = vld [vmem:[#allocation7 + $0x78] sm:$0xff]
    %v128 = vld [vmem:[#allocation5] sm:$0xff]
    %v129 = vld [vmem:[#allocation8] sm:$0xff]
    %v130 = vld [vmem:[#allocation8 + $0x8] sm:$0xff]
    %v131 = vld [vmem:[#allocation8 + $0x10] sm:$0xff]
    %v132 = vld [vmem:[#allocation8 + $0x18] sm:$0xff]
    %v133 = vld [vmem:[#allocation8 + $0x20] sm:$0xff]
    %v134 = vld [vmem:[#allocation8 + $0x28] sm:$0xff]
    %v135 = vld [vmem:[#allocation8 + $0x30] sm:$0xff]
    %v136 = vld [vmem:[#allocation8 + $0x38] sm:$0xff]
    %v137 = vld [vmem:[#allocation8 + $0x40] sm:$0xff]
    %v138 = vld [vmem:[#allocation8 + $0x48] sm:$0xff]
    %v139 = vld [vmem:[#allocation8 + $0x50] sm:$0xff]
    %v140 = vld [vmem:[#allocation8 + $0x58] sm:$0xff]
    %v141 = vld [vmem:[#allocation8 + $0x60] sm:$0xff]
    %v142 = vld [vmem:[#allocation8 + $0x68] sm:$0xff]
    %v143 = vld [vmem:[#allocation8 + $0x70] sm:$0xff]
    %v144 = vld [vmem:[#allocation8 + $0x78] sm:$0xff]
    %145 = vmatprep.subr.mxu0 0.0
    %146 = vmatpush1.msra.mxu0 %v144
    %147 = vmatprep.subr.mxu0 0.0
    %148 = vmatpush1.msra.mxu0 %v143
    %149 = vmatprep.subr.mxu0 0.0
    %150 = vmatpush1.msra.mxu0 %v142
    %151 = vmatprep.subr.mxu0 0.0
    %152 = vmatpush1.msra.mxu0 %v141
    %153 = vmatprep.subr.mxu0 0.0
    %154 = vmatpush1.msra.mxu0 %v140
    %155 = vmatprep.subr.mxu0 0.0
    %156 = vmatpush1.msra.mxu0 %v139
    %157 = vmatprep.subr.mxu0 0.0
    %158 = vmatpush1.msra.mxu0 %v138
    %159 = vmatprep.subr.mxu0 0.0
    %160 = vmatpush1.msra.mxu0 %v137
    %161 = vmatprep.subr.mxu0 0.0
    %162 = vmatpush1.msra.mxu0 %v136
    %163 = vmatprep.subr.mxu0 0.0
    %164 = vmatpush1.msra.mxu0 %v135
    %165 = vmatprep.subr.mxu0 0.0
    %166 = vmatpush1.msra.mxu0 %v134
    %167 = vmatprep.subr.mxu0 0.0
    %168 = vmatpush1.msra.mxu0 %v133
    %169 = vmatprep.subr.mxu0 0.0
    %170 = vmatpush1.msra.mxu0 %v132
    %171 = vmatprep.subr.mxu0 0.0
    %172 = vmatpush1.msra.mxu0 %v131
    %173 = vmatprep.subr.mxu0 0.0
    %174 = vmatpush1.msra.mxu0 %v130
    %175 = vmatprep.subr.mxu0 0.0
    %176 = vmatpush1.msra.mxu0 %v129
    %177 = vmatprep.subr.mxu0 0.0
    %178 = vmatpush2.msra.mxu0 0.0
    %179 = vmatprep.subr.mxu0 0.0
    %180 = vmatpush2.msra.mxu0 0.0
    %181 = vmatprep.subr.mxu0 0.0
    %182 = vmatpush2.msra.mxu0 0.0
    %183 = vmatprep.subr.mxu0 0.0
    %184 = vmatpush2.msra.mxu0 0.0
    %185 = vmatprep.subr.mxu0 0.0
    %186 = vmatpush2.msra.mxu0 0.0
    %187 = vmatprep.subr.mxu0 0.0
    %188 = vmatpush2.msra.mxu0 0.0
    %189 = vmatprep.subr.mxu0 0.0
    %190 = vmatpush2.msra.mxu0 0.0
    %191 = vmatprep.subr.mxu0 0.0
    %192 = vmatpush2.msra.mxu0 0.0
    %193 = vmatprep.subr.mxu0 0.0
    %194 = vmatpush2.msra.mxu0 0.0
    %195 = vmatprep.subr.mxu0 0.0
    %196 = vmatpush2.msra.mxu0 0.0
    %197 = vmatprep.subr.mxu0 0.0
    %198 = vmatpush2.msra.mxu0 0.0
    %199 = vmatprep.subr.mxu0 0.0
    %200 = vmatpush2.msra.mxu0 0.0
    %201 = vmatprep.subr.mxu0 0.0
    %202 = vmatpush2.msra.mxu0 0.0
    %203 = vmatprep.subr.mxu0 0.0
    %204 = vmatpush2.msra.mxu0 0.0
    %205 = vmatprep.subr.mxu0 0.0
    %206 = vmatpush2.msra.mxu0 0.0
    %207 = vmatprep.subr.mxu0 0.0
    %208 = vmatpush2.msra.mxu0 0.0
    %209 = vmatprep.mubr.f32.mxu0 0.0
    %210 = vmatmul.mubr.f32.gmra.mxu0 %v128
    %v211 = vpop.f32.mrf.mxu0
    %v212 = vadd.f32 0.0, %v211
    %v213 = vpop.f32.mrf.mxu0
    %214 = vdwg.mxu0
    %215 = vmatprep.subr.mxu0 0.0
    %216 = vmatpush1.msra.mxu0 %v127
    %217 = vmatprep.subr.mxu0 0.0
    %218 = vmatpush1.msra.mxu0 %v126
    %219 = vmatprep.subr.mxu0 0.0
    %220 = vmatpush1.msra.mxu0 %v125
    %221 = vmatprep.subr.mxu0 0.0
    %222 = vmatpush1.msra.mxu0 %v124
    %223 = vmatprep.subr.mxu0 0.0
    %224 = vmatpush1.msra.mxu0 %v123
    %225 = vmatprep.subr.mxu0 0.0
    %226 = vmatpush1.msra.mxu0 %v122
    %227 = vmatprep.subr.mxu0 0.0
    %228 = vmatpush1.msra.mxu0 %v121
    %229 = vmatprep.subr.mxu0 0.0
    %230 = vmatpush1.msra.mxu0 %v120
    %231 = vmatprep.subr.mxu0 0.0
    %232 = vmatpush1.msra.mxu0 %v119
    %233 = vmatprep.subr.mxu0 0.0
    %234 = vmatpush1.msra.mxu0 %v118
    %235 = vmatprep.subr.mxu0 0.0
    %236 = vmatpush1.msra.mxu0 %v117
    %237 = vmatprep.subr.mxu0 0.0
    %238 = vmatpush1.msra.mxu0 %v116
    %239 = vmatprep.subr.mxu0 0.0
    %240 = vmatpush1.msra.mxu0 %v115
    %241 = vmatprep.subr.mxu0 0.0
    %242 = vmatpush1.msra.mxu0 %v114
    %243 = vmatprep.subr.mxu0 0.0
    %244 = vmatpush1.msra.mxu0 %v113
    %245 = vmatprep.subr.mxu0 0.0
    %246 = vmatpush1.msra.mxu0 %v112
    %247 = vmatprep.subr.mxu0 0.0
    %248 = vmatpush2.msra.mxu0 0.0
    %249 = vmatprep.subr.mxu0 0.0
    %250 = vmatpush2.msra.mxu0 0.0
    %251 = vmatprep.subr.mxu0 0.0
    %252 = vmatpush2.msra.mxu0 0.0
    %253 = vmatprep.subr.mxu0 0.0
    %254 = vmatpush2.msra.mxu0 0.0
    %255 = vmatprep.subr.mxu0 0.0
    %256 = vmatpush2.msra.mxu0 0.0
    %257 = vmatprep.subr.mxu0 0.0
    %258 = vmatpush2.msra.mxu0 0.0
    %259 = vmatprep.subr.mxu0 0.0
    %260 = vmatpush2.msra.mxu0 0.0
    %261 = vmatprep.subr.mxu0 0.0
    %262 = vmatpush2.msra.mxu0 0.0
    %263 = vmatprep.subr.mxu0 0.0
    %264 = vmatpush2.msra.mxu0 0.0
    %265 = vmatprep.subr.mxu0 0.0
    %266 = vmatpush2.msra.mxu0 0.0
    %267 = vmatprep.subr.mxu0 0.0
    %268 = vmatpush2.msra.mxu0 0.0
    %269 = vmatprep.subr.mxu0 0.0
    %270 = vmatpush2.msra.mxu0 0.0
    %271 = vmatprep.subr.mxu0 0.0
    %272 = vmatpush2.msra.mxu0 0.0
    %273 = vmatprep.subr.mxu0 0.0
    %274 = vmatpush2.msra.mxu0 0.0
    %275 = vmatprep.subr.mxu0 0.0
    %276 = vmatpush2.msra.mxu0 0.0
    %277 = vmatprep.subr.mxu0 0.0
    %278 = vmatpush2.msra.mxu0 0.0
    %279 = vmatprep.mubr.f32.mxu0 0.0
    %280 = vmatmul.mubr.f32.gmra.mxu0 %v111
    %v281 = vpop.f32.mrf.mxu0
    %v282 = vadd.f32 %v212, %v281
    %v283 = vpop.f32.mrf.mxu0
    %284 = vdwg.mxu0
    %v285 = vld [vmem:[%s4] sm:$0x1]
    %v287 = vlaneseq
    %v288 = vshrl.u32 %v287, 7
    %v289 = vsub.s32 0, %v288
    %v290 = vrot.slane %v285, %v289
    %v292 = vadd.f32 %v282, %v290
    %v293 = vxor.u32 %v292, 2147483648
    %v294 = vmul.f32 %v293, 1.442695
    %v295 = vpow.pop %v294
    %v296 = vadd.f32 %v295, 1.0
    %v297 = vrcp.pop %v296
    %v298 = vmul.f32 1.0, %v297
    %v299 = vld [vmem:[#allocation10] sm:$0xff]
    %v300 = vld [vmem:[#allocation10 + $0x8] sm:$0xff]
    %v301 = vld [vmem:[#allocation10 + $0x10] sm:$0xff]
    %v302 = vld [vmem:[#allocation10 + $0x18] sm:$0xff]
    %v303 = vld [vmem:[#allocation10 + $0x20] sm:$0xff]
    %v304 = vld [vmem:[#allocation10 + $0x28] sm:$0xff]
    %v305 = vld [vmem:[#allocation10 + $0x30] sm:$0xff]
    %v306 = vld [vmem:[#allocation10 + $0x38] sm:$0xff]
    %v307 = vld [vmem:[#allocation10 + $0x40] sm:$0xff]
    %v308 = vld [vmem:[#allocation10 + $0x48] sm:$0xff]
    %v309 = vld [vmem:[#allocation10 + $0x50] sm:$0xff]
    %v310 = vld [vmem:[#allocation10 + $0x58] sm:$0xff]
    %v311 = vld [vmem:[#allocation10 + $0x60] sm:$0xff]
    %v312 = vld [vmem:[#allocation10 + $0x68] sm:$0xff]
    %v313 = vld [vmem:[#allocation10 + $0x70] sm:$0xff]
    %v314 = vld [vmem:[#allocation10 + $0x78] sm:$0xff]
    %v315 = vld [vmem:[%s6] sm:$0x1]
    %v317 = vlaneseq
    %v318 = vshrl.u32 %v317, 7
    %v319 = vsub.s32 0, %v318
    %v320 = vrot.slane %v315, %v319
    %322 = vmatprep.subr.mxu0 0.0
    %323 = vmatpush1.msra.mxu0 %v314
    %324 = vmatprep.subr.mxu0 0.0
    %325 = vmatpush1.msra.mxu0 %v313
    %326 = vmatprep.subr.mxu0 0.0
    %327 = vmatpush1.msra.mxu0 %v312
    %328 = vmatprep.subr.mxu0 0.0
    %329 = vmatpush1.msra.mxu0 %v311
    %330 = vmatprep.subr.mxu0 0.0
    %331 = vmatpush1.msra.mxu0 %v310
    %332 = vmatprep.subr.mxu0 0.0
    %333 = vmatpush1.msra.mxu0 %v309
    %334 = vmatprep.subr.mxu0 0.0
    %335 = vmatpush1.msra.mxu0 %v308
    %336 = vmatprep.subr.mxu0 0.0
    %337 = vmatpush1.msra.mxu0 %v307
    %338 = vmatprep.subr.mxu0 0.0
    %339 = vmatpush1.msra.mxu0 %v306
    %340 = vmatprep.subr.mxu0 0.0
    %341 = vmatpush1.msra.mxu0 %v305
    %342 = vmatprep.subr.mxu0 0.0
    %343 = vmatpush1.msra.mxu0 %v304
    %344 = vmatprep.subr.mxu0 0.0
    %345 = vmatpush1.msra.mxu0 %v303
    %346 = vmatprep.subr.mxu0 0.0
    %347 = vmatpush1.msra.mxu0 %v302
    %348 = vmatprep.subr.mxu0 0.0
    %349 = vmatpush1.msra.mxu0 %v301
    %350 = vmatprep.subr.mxu0 0.0
    %351 = vmatpush1.msra.mxu0 %v300
    %352 = vmatprep.subr.mxu0 0.0
    %353 = vmatpush1.msra.mxu0 %v299
    %354 = vmatprep.subr.mxu0 0.0
    %355 = vmatpush2.msra.mxu0 0.0
    %356 = vmatprep.subr.mxu0 0.0
    %357 = vmatpush2.msra.mxu0 0.0
    %358 = vmatprep.subr.mxu0 0.0
    %359 = vmatpush2.msra.mxu0 0.0
    %360 = vmatprep.subr.mxu0 0.0
    %361 = vmatpush2.msra.mxu0 0.0
    %362 = vmatprep.subr.mxu0 0.0
    %363 = vmatpush2.msra.mxu0 0.0
    %364 = vmatprep.subr.mxu0 0.0
    %365 = vmatpush2.msra.mxu0 0.0
    %366 = vmatprep.subr.mxu0 0.0
    %367 = vmatpush2.msra.mxu0 0.0
    %368 = vmatprep.subr.mxu0 0.0
    %369 = vmatpush2.msra.mxu0 0.0
    %370 = vmatprep.subr.mxu0 0.0
    %371 = vmatpush2.msra.mxu0 0.0
    %372 = vmatprep.subr.mxu0 0.0
    %373 = vmatpush2.msra.mxu0 0.0
    %374 = vmatprep.subr.mxu0 0.0
    %375 = vmatpush2.msra.mxu0 0.0
    %376 = vmatprep.subr.mxu0 0.0
    %377 = vmatpush2.msra.mxu0 0.0
    %378 = vmatprep.subr.mxu0 0.0
    %379 = vmatpush2.msra.mxu0 0.0
    %380 = vmatprep.subr.mxu0 0.0
    %381 = vmatpush2.msra.mxu0 0.0
    %382 = vmatprep.subr.mxu0 0.0
    %383 = vmatpush2.msra.mxu0 0.0
    %384 = vmatprep.subr.mxu0 0.0
    %385 = vmatpush2.msra.mxu0 0.0
    %386 = vmatprep.mubr.f32.mxu0 0.0
    %387 = vmatmul.mubr.f32.gmra.mxu0 %v298
    %v388 = vpop.f32.mrf.mxu0
    %v389 = vadd.f32 %v320, %v388
    %v390 = vpop.f32.mrf.mxu0
    %391 = vdwg.mxu0
    %v392 = vxor.u32 %v389, 2147483648
    %v393 = vmul.f32 %v392, 1.442695
    %v394 = vpow.pop %v393
    %v395 = vadd.f32 %v394, 1.0
    %v396 = vrcp.pop %v395
    %v397 = vmul.f32 1.0, %v396
    %v398 = vld [vmem:[#allocation11] sm:$0xff]
    %v399 = vld [vmem:[#allocation11 + $0x8] sm:$0xff]
    %v400 = vld [vmem:[#allocation11 + $0x10] sm:$0xff]
    %v401 = vld [vmem:[#allocation11 + $0x18] sm:$0xff]
    %v402 = vld [vmem:[#allocation11 + $0x20] sm:$0xff]
    %v403 = vld [vmem:[#allocation11 + $0x28] sm:$0xff]
    %v404 = vld [vmem:[#allocation11 + $0x30] sm:$0xff]
    %v405 = vld [vmem:[#allocation11 + $0x38] sm:$0xff]
    %v406 = vld [vmem:[#allocation11 + $0x40] sm:$0xff]
    %v407 = vld [vmem:[#allocation11 + $0x48] sm:$0xff]
    %v408 = vld [vmem:[#allocation11 + $0x50] sm:$0xff]
    %v409 = vld [vmem:[#allocation11 + $0x58] sm:$0xff]
    %v410 = vld [vmem:[#allocation11 + $0x60] sm:$0xff]
    %v411 = vld [vmem:[#allocation11 + $0x68] sm:$0xff]
    %v412 = vld [vmem:[#allocation11 + $0x70] sm:$0xff]
    %v413 = vld [vmem:[#allocation11 + $0x78] sm:$0xff]
    %v414 = vld [vmem:[%s8] sm:$0x1]
    %v416 = vlaneseq
    %v417 = vshrl.u32 %v416, 7
    %v418 = vsub.s32 0, %v417
    %v419 = vrot.slane %v414, %v418
    %421 = vmatprep.subr.mxu0 0.0
    %422 = vmatpush1.msra.mxu0 %v413
    %423 = vmatprep.subr.mxu0 0.0
    %424 = vmatpush1.msra.mxu0 %v412
    %425 = vmatprep.subr.mxu0 0.0
    %426 = vmatpush1.msra.mxu0 %v411
    %427 = vmatprep.subr.mxu0 0.0
    %428 = vmatpush1.msra.mxu0 %v410
    %429 = vmatprep.subr.mxu0 0.0
    %430 = vmatpush1.msra.mxu0 %v409
    %431 = vmatprep.subr.mxu0 0.0
    %432 = vmatpush1.msra.mxu0 %v408
    %433 = vmatprep.subr.mxu0 0.0
    %434 = vmatpush1.msra.mxu0 %v407
    %435 = vmatprep.subr.mxu0 0.0
    %436 = vmatpush1.msra.mxu0 %v406
    %437 = vmatprep.subr.mxu0 0.0
    %438 = vmatpush1.msra.mxu0 %v405
    %439 = vmatprep.subr.mxu0 0.0
    %440 = vmatpush1.msra.mxu0 %v404
    %441 = vmatprep.subr.mxu0 0.0
    %442 = vmatpush1.msra.mxu0 %v403
    %443 = vmatprep.subr.mxu0 0.0
    %444 = vmatpush1.msra.mxu0 %v402
    %445 = vmatprep.subr.mxu0 0.0
    %446 = vmatpush1.msra.mxu0 %v401
    %447 = vmatprep.subr.mxu0 0.0
    %448 = vmatpush1.msra.mxu0 %v400
    %449 = vmatprep.subr.mxu0 0.0
    %450 = vmatpush1.msra.mxu0 %v399
    %451 = vmatprep.subr.mxu0 0.0
    %452 = vmatpush1.msra.mxu0 %v398
    %453 = vmatprep.subr.mxu0 0.0
    %454 = vmatpush2.msra.mxu0 0.0
    %455 = vmatprep.subr.mxu0 0.0
    %456 = vmatpush2.msra.mxu0 0.0
    %457 = vmatprep.subr.mxu0 0.0
    %458 = vmatpush2.msra.mxu0 0.0
    %459 = vmatprep.subr.mxu0 0.0
    %460 = vmatpush2.msra.mxu0 0.0
    %461 = vmatprep.subr.mxu0 0.0
    %462 = vmatpush2.msra.mxu0 0.0
    %463 = vmatprep.subr.mxu0 0.0
    %464 = vmatpush2.msra.mxu0 0.0
    %465 = vmatprep.subr.mxu0 0.0
    %466 = vmatpush2.msra.mxu0 0.0
    %467 = vmatprep.subr.mxu0 0.0
    %468 = vmatpush2.msra.mxu0 0.0
    %469 = vmatprep.subr.mxu0 0.0
    %470 = vmatpush2.msra.mxu0 0.0
    %471 = vmatprep.subr.mxu0 0.0
    %472 = vmatpush2.msra.mxu0 0.0
    %473 = vmatprep.subr.mxu0 0.0
    %474 = vmatpush2.msra.mxu0 0.0
    %475 = vmatprep.subr.mxu0 0.0
    %476 = vmatpush2.msra.mxu0 0.0
    %477 = vmatprep.subr.mxu0 0.0
    %478 = vmatpush2.msra.mxu0 0.0
    %479 = vmatprep.subr.mxu0 0.0
    %480 = vmatpush2.msra.mxu0 0.0
    %481 = vmatprep.subr.mxu0 0.0
    %482 = vmatpush2.msra.mxu0 0.0
    %483 = vmatprep.subr.mxu0 0.0
    %484 = vmatpush2.msra.mxu0 0.0
    %485 = vmatprep.mubr.f32.mxu0 0.0
    %486 = vmatmul.mubr.f32.gmra.mxu0 %v397
    %v487 = vpop.f32.mrf.mxu0
    %v488 = vadd.f32 %v419, %v487
    %v489 = vpop.f32.mrf.mxu0
    %490 = vdwg.mxu0
    %491 = vst [vmem:[#allocation13] sm:$0xff] %v488
    // Predicated region
    $region62: #{tpu_custom_call.1} parent=1 // pred_check
      _
    $region63: #{tpu_custom_call.1} parent=1 // pred_check_branch
      %493 = sbr.rel (0) target = $region65
    $region64: #{tpu_custom_call.1} parent=1 // pred_region
      %s495 = ssub.s32 128, 128
      %496 = vsyncadd [#allocation4], %s495
      %s498 = sshll.u32 [#allocation13], 4
      %s499 = int_to_ptr.vmem [resolvable:$true] %s498
      %501 = dma.vmem_to_hbm [thread:$0]  %s499, 128, %s9, [#allocation4]
    $region65: #{tpu_custom_call.1} parent=1 // pred_fallthru
      _
    // Predicated region
    $region66: #{tpu_custom_call.1} parent=1 // pred_check
      _
    $region67: #{tpu_custom_call.1} parent=1 // pred_check_branch
      %503 = sbr.rel (0) target = $region69
    $region68: #{tpu_custom_call.1} parent=1 // pred_region
      %504 = dma.done [#allocation4], 128
    $region69: #{tpu_custom_call.1} parent=1 // pred_fallthru
      _
    %505 = vsyncpa [#allocation3], 1
    %506 = vsyncpa [#allocation6], 1
    %507 = vsyncpa [#allocation9], 1
    %508 = vsyncpa [#allocation12], 1
    %509 = vsyncpa [#allocation4], 1

</llo_original>
